<compile_context>
chip_gen: v7x
topology: tpu7x:2x2x1
jax: 0.10.0
libtpu: 0.0.40
codegen_flags: <defaults>
</compile_context>

<pallas_src>
import numpy as np
import jax
import jax.numpy as jnp
from jax.experimental import pallas as pl
from jax.experimental.pallas import tpu as pltpu


def _composite_perm(n_wires: int) -> np.ndarray:
    """Composite permutation of the whole CNOT ring: out[:, j] = in[:, perm[j]]."""
    D = 1 << n_wires
    perm = np.arange(D)
    idx = np.arange(D)
    for i in range(n_wires):
        c, t = i, (i + 1) % n_wires
        pc, pt = n_wires - 1 - c, n_wires - 1 - t      # wire 0 = MSB (torchquantum layout)
        gate = np.where(((idx >> pc) & 1) == 1, idx ^ (1 << pt), idx)
        perm = perm[gate]
    return perm


def _bf16_terms(x):
    """Exact split of fp32 `x` into three bf16 terms with hi + mid + lo == x.

    Truncation split (mask low 16 encoding bits): 24 mantissa bits = 8 + 8 + 8,
    each chunk is exactly bf16-representable, every f32 subtraction/re-sum is
    exact, so a 0/1-matrix matmul over the three terms reproduces fp32 exactly.
    """
    mask = jnp.uint32(0xFFFF0000)
    bits = pltpu.bitcast(x, jnp.uint32)
    hi_f = pltpu.bitcast(bits & mask, jnp.float32)
    r1 = x - hi_f                                      # exact: <= 16 mantissa bits left
    r1_bits = pltpu.bitcast(r1, jnp.uint32)
    mid_f = pltpu.bitcast(r1_bits & mask, jnp.float32)
    lo_f = r1 - mid_f                                  # exact: <= 8 mantissa bits, fits bf16
    return (hi_f.astype(jnp.bfloat16),
            mid_f.astype(jnp.bfloat16),
            lo_f.astype(jnp.bfloat16))


def cnot_ring_kernel(re_ref, im_ref, pmat_ref, re_out_ref, im_out_ref):
    p = pmat_ref[...]                                  # (D, D) bf16 0/1 permutation matrix

    def permute(x):                                    # x: (TB, D) fp32
        hi, mid, lo = _bf16_terms(x)
        acc = jnp.dot(hi, p, preferred_element_type=jnp.float32)
        acc = acc + jnp.dot(mid, p, preferred_element_type=jnp.float32)
        acc = acc + jnp.dot(lo, p, preferred_element_type=jnp.float32)
        return acc                                     # exact: one nonzero product / column

    re_out_ref[...] = permute(re_ref[...])
    im_out_ref[...] = permute(im_ref[...])


def _round_up(x, m):
    return (x + m - 1) // m * m


def cnot_ring(re, im, n_wires):
    """Apply the CNOT ring to a (batch, 2**n_wires) state given as fp32 re/im planes."""
    B, D = re.shape
    assert D == (1 << n_wires)
    assert re.dtype == jnp.float32 and im.dtype == jnp.float32
    # TODO(synk): for n_wires > 10 the one-hot matrix gets large; switch to the n
    # conditional-flip decomposition (stride >= 128 flips as sublane/block swaps,
    # sub-128 flips as one 128x128 matmul) to keep the kernel purely DMA-bound.
    assert D <= 1024, "one-hot matmul path supports n_wires <= 10"

    perm = _composite_perm(n_wires)

    # Lane packing: for D < 128 fold groups of g batch rows into the lane axis
    # (row-major reshape => free) so stores stay lane-dense (no vst.msk).
    if D < 128 and B % (128 // D) == 0:
        g = 128 // D
        Bp, Dp = B // g, g * D
        perm_p = np.concatenate([perm + k * D for k in range(g)])
    else:
        g, Bp, Dp, perm_p = 1, B, D, perm
    re_in = re.reshape(Bp, Dp)
    im_in = im.reshape(Bp, Dp)

    pmat_np = np.zeros((Dp, Dp), dtype=np.float32)
    pmat_np[perm_p, np.arange(Dp)] = 1.0               # out[:, j] = in[:, perm[j]]
    pmat = jnp.asarray(pmat_np, dtype=jnp.bfloat16)    # bf16 is exact for a 0/1 matrix

    # Row tile: ~4 MiB of fp32 state per plane, sublane-aligned, and >= 2 grid
    # steps when the batch allows (v7x has 2 TensorCores per chip).
    TILE_BYTES = 4 << 20
    rows_cap = max(8, (TILE_BYTES // (4 * Dp)) // 8 * 8)
    if Bp <= 8:
        TB = Bp                                        # single block == full array dims
    else:
        TB = min(rows_cap, _round_up(Bp, 8))
        if pl.cdiv(Bp, TB) < 2:
            TB = max(8, _round_up(pl.cdiv(Bp, 2), 8))
    grid = (pl.cdiv(Bp, TB),)

    # The permutation matrix is grid-invariant: single-buffer it when it is big
    # enough to matter for VMEM (D >= 512); default double-buffering otherwise.
    if Dp >= 512:
        pmat_spec = pl.BlockSpec((Dp, Dp), lambda i: (0, 0),
                                 pipeline_mode=pl.Buffered(1))
        pmat_bufs = 1
    else:
        pmat_spec = pl.BlockSpec((Dp, Dp), lambda i: (0, 0))
        pmat_bufs = 2

    state_spec = pl.BlockSpec((TB, Dp), lambda i: (i, 0))
    vmem_need = 8 * TB * Dp * 4 + pmat_bufs * Dp * Dp * 2   # re/im in+out, double-buffered
    vmem_limit = min(56 << 20, max(32 << 20, (vmem_need * 5) // 4))

    out_re, out_im = pl.pallas_call(
        cnot_ring_kernel,
        grid=grid,
        in_specs=[state_spec, state_spec, pmat_spec],
        out_specs=(state_spec, state_spec),
        out_shape=(jax.ShapeDtypeStruct((Bp, Dp), jnp.float32),
                   jax.ShapeDtypeStruct((Bp, Dp), jnp.float32)),
        input_output_aliases={0: 0, 1: 1},             # permute the state in place
        compiler_params=pltpu.CompilerParams(
            dimension_semantics=("parallel",),
            vmem_limit_bytes=int(vmem_limit)),
    )(re_in, im_in, pmat)

    return out_re.reshape(B, D), out_im.reshape(B, D)


def cnot_ring_reference(state, n_wires):
    """Pure-numpy reference reproducing torchquantum CNOT semantics."""
    idx = np.arange(1 << n_wires)
    for i in range(n_wires):
        c, t = i, (i + 1) % n_wires
        pc, pt = n_wires - 1 - c, n_wires - 1 - t
        gate = np.where(((idx >> pc) & 1) == 1, idx ^ (1 << pt), idx)
        state = state[:, gate]
    return state


def _run_case(n_wires, B):
    D = 1 << n_wires
    k1, k2 = jax.random.split(jax.random.PRNGKey(0))
    re = jax.random.normal(k1, (B, D), dtype=jnp.float32)
    im = jax.random.normal(k2, (B, D), dtype=jnp.float32)
    norm = jnp.sqrt(jnp.sum(re * re + im * im, axis=-1, keepdims=True))
    re, im = re / norm, im / norm                      # valid normalized quantum state

    re_np, im_np = np.asarray(re), np.asarray(im)      # host copies for the reference

    fn = jax.jit(lambda r, i: cnot_ring(r, i, n_wires), donate_argnums=(0, 1))
    re_out, im_out = jax.block_until_ready(fn(re, im))

    ref = cnot_ring_reference(re_np.astype(np.float64) + 1j * im_np.astype(np.float64),
                              n_wires)
    np.testing.assert_allclose(np.asarray(re_out), ref.real, atol=1e-6, rtol=1e-6)
    np.testing.assert_allclose(np.asarray(im_out), ref.imag, atol=1e-6, rtol=1e-6)


if __name__ == "__main__":
    _run_case(n_wires=7, B=16)   # D = 128: full lane row, 2 parallel grid steps
    _run_case(n_wires=4, B=8)    # D = 16: lane-packed path (8 rows -> 128 lanes)
    print("KERNEL_OK")
</pallas_src>

<mosaic_0001>
module attributes {stable_mosaic.version = 11 : i64} {
  func.func @cnot_ring_kernel(%arg0: i32, %arg1: memref<8x128xf32, #tpu.memory_space<vmem>>, %arg2: memref<8x128xf32, #tpu.memory_space<vmem>>, %arg3: memref<128x128xbf16, #tpu.memory_space<vmem>>, %arg4: memref<8x128xf32, #tpu.memory_space<vmem>>, %arg5: memref<8x128xf32, #tpu.memory_space<vmem>>) attributes {dimension_semantics = [#tpu.dimension_semantics<parallel>], iteration_bounds = array<i64: 2>, scalar_prefetch = 0 : i64, scratch_operands = 0 : i64, tpu.core_type = #tpu.core_type<tc>, window_params = [{transform_indices = @transform_0, window_bounds = array<i64: 8, 128>}, {transform_indices = @transform_1, window_bounds = array<i64: 8, 128>}, {pipeline_mode = #tpu.pipeline_mode<synchronous>, transform_indices = @transform_2, window_bounds = array<i64: 128, 128>}, {transform_indices = @transform_3, window_bounds = array<i64: 8, 128>}, {transform_indices = @transform_4, window_bounds = array<i64: 8, 128>}]} {
    %c0 = arith.constant 0 : index
    %c0_0 = arith.constant 0 : index
    %0 = vector.load %arg3[%c0, %c0_0] : memref<128x128xbf16, #tpu.memory_space<vmem>>, vector<128x128xbf16>
    %c0_1 = arith.constant 0 : index
    %c0_2 = arith.constant 0 : index
    %1 = vector.load %arg1[%c0_1, %c0_2] : memref<8x128xf32, #tpu.memory_space<vmem>>, vector<8x128xf32>
    %2 = tpu.bitcast %1 : vector<8x128xf32> -> vector<8x128xi32>
    %c-65536_i32 = arith.constant -65536 : i32
    %3 = vector.broadcast %c-65536_i32 : i32 to vector<8x128xi32>
    %4 = arith.andi %2, %3 : vector<8x128xi32>
    %5 = tpu.bitcast %4 : vector<8x128xi32> -> vector<8x128xf32>
    %6 = arith.subf %1, %5 : vector<8x128xf32>
    %7 = tpu.bitcast %6 : vector<8x128xf32> -> vector<8x128xi32>
    %c-65536_i32_3 = arith.constant -65536 : i32
    %8 = vector.broadcast %c-65536_i32_3 : i32 to vector<8x128xi32>
    %9 = arith.andi %7, %8 : vector<8x128xi32>
    %10 = tpu.bitcast %9 : vector<8x128xi32> -> vector<8x128xf32>
    %11 = arith.subf %6, %10 : vector<8x128xf32>
    %12 = arith.truncf %5 : vector<8x128xf32> to vector<8x128xbf16>
    %13 = arith.truncf %10 : vector<8x128xf32> to vector<8x128xbf16>
    %14 = arith.truncf %11 : vector<8x128xf32> to vector<8x128xbf16>
    %cst = arith.constant dense<0.000000e+00> : vector<8x128xf32>
    %15 = tpu.matmul %12, %0, %cst {dimension_numbers = #tpu.dot_dimension_numbers<[1], [0], [0], [1], [0, 0, 1, 1], [], []>} : vector<8x128xbf16>, vector<128x128xbf16>, vector<8x128xf32> -> vector<8x128xf32>
    %cst_4 = arith.constant dense<0.000000e+00> : vector<8x128xf32>
    %16 = tpu.matmul %13, %0, %cst_4 {dimension_numbers = #tpu.dot_dimension_numbers<[1], [0], [0], [1], [0, 0, 1, 1], [], []>} : vector<8x128xbf16>, vector<128x128xbf16>, vector<8x128xf32> -> vector<8x128xf32>
    %17 = arith.addf %15, %16 : vector<8x128xf32>
    %cst_5 = arith.constant dense<0.000000e+00> : vector<8x128xf32>
    %18 = tpu.matmul %14, %0, %cst_5 {dimension_numbers = #tpu.dot_dimension_numbers<[1], [0], [0], [1], [0, 0, 1, 1], [], []>} : vector<8x128xbf16>, vector<128x128xbf16>, vector<8x128xf32> -> vector<8x128xf32>
    %19 = arith.addf %17, %18 : vector<8x128xf32>
    %c0_6 = arith.constant 0 : index
    %c0_7 = arith.constant 0 : index
    %20 = vector.load %arg4[%c0_6, %c0_7] : memref<8x128xf32, #tpu.memory_space<vmem>>, vector<8x128xf32>
    tpu.vector_store %arg4[%c0_6, %c0_7], %19 {strides = array<i32>} : memref<8x128xf32, #tpu.memory_space<vmem>>, vector<8x128xf32>,
    %c0_8 = arith.constant 0 : index
    %c0_9 = arith.constant 0 : index
    %21 = vector.load %arg2[%c0_8, %c0_9] : memref<8x128xf32, #tpu.memory_space<vmem>>, vector<8x128xf32>
    %22 = tpu.bitcast %21 : vector<8x128xf32> -> vector<8x128xi32>
    %c-65536_i32_10 = arith.constant -65536 : i32
    %23 = vector.broadcast %c-65536_i32_10 : i32 to vector<8x128xi32>
    %24 = arith.andi %22, %23 : vector<8x128xi32>
    %25 = tpu.bitcast %24 : vector<8x128xi32> -> vector<8x128xf32>
    %26 = arith.subf %21, %25 : vector<8x128xf32>
    %27 = tpu.bitcast %26 : vector<8x128xf32> -> vector<8x128xi32>
    %c-65536_i32_11 = arith.constant -65536 : i32
    %28 = vector.broadcast %c-65536_i32_11 : i32 to vector<8x128xi32>
    %29 = arith.andi %27, %28 : vector<8x128xi32>
    %30 = tpu.bitcast %29 : vector<8x128xi32> -> vector<8x128xf32>
    %31 = arith.subf %26, %30 : vector<8x128xf32>
    %32 = arith.truncf %25 : vector<8x128xf32> to vector<8x128xbf16>
    %33 = arith.truncf %30 : vector<8x128xf32> to vector<8x128xbf16>
    %34 = arith.truncf %31 : vector<8x128xf32> to vector<8x128xbf16>
    %cst_12 = arith.constant dense<0.000000e+00> : vector<8x128xf32>
    %35 = tpu.matmul %32, %0, %cst_12 {dimension_numbers = #tpu.dot_dimension_numbers<[1], [0], [0], [1], [0, 0, 1, 1], [], []>} : vector<8x128xbf16>, vector<128x128xbf16>, vector<8x128xf32> -> vector<8x128xf32>
    %cst_13 = arith.constant dense<0.000000e+00> : vector<8x128xf32>
    %36 = tpu.matmul %33, %0, %cst_13 {dimension_numbers = #tpu.dot_dimension_numbers<[1], [0], [0], [1], [0, 0, 1, 1], [], []>} : vector<8x128xbf16>, vector<128x128xbf16>, vector<8x128xf32> -> vector<8x128xf32>
    %37 = arith.addf %35, %36 : vector<8x128xf32>
    %cst_14 = arith.constant dense<0.000000e+00> : vector<8x128xf32>
    %38 = tpu.matmul %34, %0, %cst_14 {dimension_numbers = #tpu.dot_dimension_numbers<[1], [0], [0], [1], [0, 0, 1, 1], [], []>} : vector<8x128xbf16>, vector<128x128xbf16>, vector<8x128xf32> -> vector<8x128xf32>
    %39 = arith.addf %37, %38 : vector<8x128xf32>
    %c0_15 = arith.constant 0 : index
    %c0_16 = arith.constant 0 : index
    %40 = vector.load %arg5[%c0_15, %c0_16] : memref<8x128xf32, #tpu.memory_space<vmem>>, vector<8x128xf32>
    tpu.vector_store %arg5[%c0_15, %c0_16], %39 {strides = array<i32>} : memref<8x128xf32, #tpu.memory_space<vmem>>, vector<8x128xf32>,
    return
  }
  func.func @transform_0(%arg0: i32) -> (i32, i32) {
    %c0_i32 = arith.constant 0 : i32
    %c0_i32_0 = arith.constant 0 : i32
    return %arg0, %c0_i32 : i32, i32
  }
  func.func @transform_1(%arg0: i32) -> (i32, i32) {
    %c0_i32 = arith.constant 0 : i32
    %c0_i32_0 = arith.constant 0 : i32
    return %arg0, %c0_i32 : i32, i32
  }
  func.func @transform_2(%arg0: i32) -> (i32, i32) {
    %c0_i32 = arith.constant 0 : i32
    %c0_i32_0 = arith.constant 0 : i32
    %c0_i32_1 = arith.constant 0 : i32
    return %c0_i32, %c0_i32_0 : i32, i32
  }
  func.func @transform_3(%arg0: i32) -> (i32, i32) {
    %c0_i32 = arith.constant 0 : i32
    %c0_i32_0 = arith.constant 0 : i32
    return %arg0, %c0_i32 : i32, i32
  }
  func.func @transform_4(%arg0: i32) -> (i32, i32) {
    %c0_i32 = arith.constant 0 : i32
    %c0_i32_0 = arith.constant 0 : i32
    return %arg0, %c0_i32 : i32, i32
  }
}

</mosaic_0001>

<llo_original>
// kernel: _lambda_.1
$region0: #{_lambda_.1}
  #allocation0 [shape = 'u32[]', space=smem, size = 0x4, offset = 0x4, fixed_abs, tag = 'smem constant byte address 0x4 - core index']
  #allocation1 [shape = 'u32[144,128]{1,0:T(1,128)}', space=vmem, size = 0x12000, scoped, tag = 'internal scratch']
  %s0 = inlined_call_operand.hbm [shape: f32[16,128], index: 0, kind: input, shape index: {}, may-alias: {0,3}]
  %s1 = inlined_call_operand.hbm [shape: f32[16,128], index: 1, kind: input, shape index: {}, may-alias: {1,4}]
  %s2 = inlined_call_operand.hbm [shape: bf16[128,128], index: 2, kind: input, shape index: {}]
  %s3 = inlined_call_operand.hbm [shape: f32[16,128], index: 3, kind: output, shape index: {0}, may-alias: {0,3}]
  %s4 = inlined_call_operand.hbm [shape: f32[16,128], index: 4, kind: output, shape index: {1}, may-alias: {1,4}]
  %5 = xla_tuple %s3, %s4
  %s6 = sld [smem:[#allocation0]]
  $region65: #{_lambda_.1} parent=0
    _
  %s8 = ssub.s32 1, %s6
  %s9 = scalar_select 0, %s8, %s6
  $region1: #{_lambda_.1} parent=0
    #allocation2 [shape = 'u8[8192]{0}', space=vmem, size = 0x2000, scoped, tag = 'input window, operand 0']
    #allocation3 [shape = 's32[2]{0}', space=sflag, size = 0x8, scoped, tag = 'scoped memory for _lambda_.1']
    #allocation4 [shape = 's32[2]{0}', space=sflag, size = 0x8, scoped, tag = 'scoped memory for _lambda_.1']
    #allocation5 [shape = 'u8[8192]{0}', space=vmem, size = 0x2000, scoped, tag = 'input window, operand 1']
    #allocation6 [shape = 's32[2]{0}', space=sflag, size = 0x8, scoped, tag = 'scoped memory for _lambda_.1']
    #allocation7 [shape = 'u8[32768]{0}', space=vmem, size = 0x8000, scoped, tag = 'input window, operand 2, single buffered']
    #allocation8 [shape = 'u8[8192]{0}', space=vmem, size = 0x2000, scoped, tag = 'output window, operand 0']
    #allocation9 [shape = 'u8[8192]{0}', space=vmem, size = 0x2000, scoped, tag = 'output window, operand 1']
    #allocation10 [shape = 's32[2]{0}', space=sflag, size = 0x8, scoped, tag = 'scoped memory for _lambda_.1']
    %10 = vsyncpa [#allocation3], 0
    %s11 = scalar_lea.sflag [#allocation3], 1
    %12 = vsyncpa %s11, 0
    %13 = vsyncpa [#allocation6], 0
    %s14 = scalar_lea.sflag [#allocation6], 1
    %15 = vsyncpa %s14, 0
    %16 = vsyncpa [#allocation4], 0
    %s17 = scalar_lea.sflag [#allocation4], 1
    %18 = vsyncpa %s17, 0
    %19 = vsyncpa [#allocation10], 0
    %s20 = scalar_lea.sflag [#allocation10], 1
    %21 = vsyncpa %s20, 0
    loop: start=0, step=1, limit=4
    $region2: #{_lambda_.1} parent=1 // loop_pre_header
      _
    $region3: #{_lambda_.1} parent=1 // loop_header
      %s23 = sphi 0, %s27
      %p24 = scmp.ge.s32.totalorder %s23, 4
      %s33 = sphi 0, %s35
      %s36 = sphi 0, %s33
      %s37 = sphi 0, %s36
      %s53 = sphi 0, %s37
      %s59 = sphi 0, %s61
      %s62 = sphi 0, %s59
      %s63 = sphi 0, %s62
      %s79 = sphi 0, %s63
      %s83 = sphi 0, %s83
      %s85 = sphi 0, %s83
      %s86 = sphi 0, %s85
      %s100 = sphi 0, %s86
      %s106 = sphi 0, %s108
      %s109 = sphi 0, %s106
      %s110 = sphi 0, %s109
      %s126 = sphi 0, %s110
      %s132 = sphi 0, %s134
      %s135 = sphi 0, %s132
      %s136 = sphi 0, %s135
      %s152 = sphi 0, %s136
    $region4: #{_lambda_.1} parent=1 // loop_header_branch
      %26 = sbr.rel (%p24) target = $region8
    $region5: #{_lambda_.1} parent=1 // loop_body
      %s28 = ssub.s32 %s23, 1
      %s29 = ssub.s32 %s23, 2
      %s30 = sadd.s32 %s23, 1
      %s31 = ssub.s32 %s23, %s30
      %p32 = scmp.eq.s32.totalorder %s31, 0
      %s34 = sadd.s32 %s33, 1
      %s35 = scalar_select %p32, %s33, %s34
      %p38 = pneg %p32
      %p39 = scmp.eq.s32.totalorder %s23, 1
      %p40 = por %p38, %p39
      %p41 = scmp.ne.s32.totalorder %s33, %s36
      %p42 = scmp.eq.s32.totalorder %s23, 0
      %p43 = por %p41, %p42
      %p44 = scmp.ne.s32.totalorder %s33, %s36
      %p45 = scmp.eq.s32.totalorder %s28, 1
      %p46 = por %p44, %p45
      %p47 = scmp.ne.s32.totalorder %s36, %s37
      %p48 = scmp.eq.s32.totalorder %s28, 0
      %p49 = por %p47, %p48
      %p50 = scmp.ne.s32.totalorder %s36, %s37
      %p51 = scmp.eq.s32.totalorder %s29, 1
      %p52 = por %p50, %p51
      %p54 = scmp.ne.s32.totalorder %s37, %s53
      %p55 = scmp.eq.s32.totalorder %s29, 0
      %p56 = por %p54, %p55
      %s57 = ssub.s32 %s23, %s30
      %p58 = scmp.eq.s32.totalorder %s57, 0
      %s60 = sadd.s32 %s59, 1
      %s61 = scalar_select %p58, %s59, %s60
      %p64 = pneg %p58
      %p65 = scmp.eq.s32.totalorder %s23, 1
      %p66 = por %p64, %p65
      %p67 = scmp.ne.s32.totalorder %s59, %s62
      %p68 = scmp.eq.s32.totalorder %s23, 0
      %p69 = por %p67, %p68
      %p70 = scmp.ne.s32.totalorder %s59, %s62
      %p71 = scmp.eq.s32.totalorder %s28, 1
      %p72 = por %p70, %p71
      %p73 = scmp.ne.s32.totalorder %s62, %s63
      %p74 = scmp.eq.s32.totalorder %s28, 0
      %p75 = por %p73, %p74
      %p76 = scmp.ne.s32.totalorder %s62, %s63
      %p77 = scmp.eq.s32.totalorder %s29, 1
      %p78 = por %p76, %p77
      %p80 = scmp.ne.s32.totalorder %s63, %s79
      %p81 = scmp.eq.s32.totalorder %s29, 0
      %p82 = por %p80, %p81
      %s84 = sadd.s32 %s83, 1
      %p87 = scmp.eq.s32.totalorder %s23, 1
      %p88 = scmp.ne.s32.totalorder %s83, %s85
      %p89 = scmp.eq.s32.totalorder %s23, 0
      %p90 = por %p88, %p89
      %p91 = scmp.ne.s32.totalorder %s83, %s85
      %p92 = scmp.eq.s32.totalorder %s28, 1
      %p93 = por %p91, %p92
      %p94 = scmp.ne.s32.totalorder %s85, %s86
      %p95 = scmp.eq.s32.totalorder %s28, 0
      %p96 = por %p94, %p95
      %p97 = scmp.ne.s32.totalorder %s85, %s86
      %p98 = scmp.eq.s32.totalorder %s29, 1
      %p99 = por %p97, %p98
      %p101 = scmp.ne.s32.totalorder %s86, %s100
      %p102 = scmp.eq.s32.totalorder %s29, 0
      %p103 = por %p101, %p102
      %s104 = ssub.s32 %s23, %s30
      %p105 = scmp.eq.s32.totalorder %s104, 0
      %s107 = sadd.s32 %s106, 1
      %s108 = scalar_select %p105, %s106, %s107
      %p111 = pneg %p105
      %p112 = scmp.eq.s32.totalorder %s23, 1
      %p113 = por %p111, %p112
      %p114 = scmp.ne.s32.totalorder %s106, %s109
      %p115 = scmp.eq.s32.totalorder %s23, 0
      %p116 = por %p114, %p115
      %p117 = scmp.ne.s32.totalorder %s106, %s109
      %p118 = scmp.eq.s32.totalorder %s28, 1
      %p119 = por %p117, %p118
      %p120 = scmp.ne.s32.totalorder %s109, %s110
      %p121 = scmp.eq.s32.totalorder %s28, 0
      %p122 = por %p120, %p121
      %p123 = scmp.ne.s32.totalorder %s109, %s110
      %p124 = scmp.eq.s32.totalorder %s29, 1
      %p125 = por %p123, %p124
      %p127 = scmp.ne.s32.totalorder %s110, %s126
      %p128 = scmp.eq.s32.totalorder %s29, 0
      %p129 = por %p127, %p128
      %s130 = ssub.s32 %s23, %s30
      %p131 = scmp.eq.s32.totalorder %s130, 0
      %s133 = sadd.s32 %s132, 1
      %s134 = scalar_select %p131, %s132, %s133
      %p137 = pneg %p131
      %p138 = scmp.eq.s32.totalorder %s23, 1
      %p139 = por %p137, %p138
      %p140 = scmp.ne.s32.totalorder %s132, %s135
      %p141 = scmp.eq.s32.totalorder %s23, 0
      %p142 = por %p140, %p141
      %p143 = scmp.ne.s32.totalorder %s132, %s135
      %p144 = scmp.eq.s32.totalorder %s28, 1
      %p145 = por %p143, %p144
      %p146 = scmp.ne.s32.totalorder %s135, %s136
      %p147 = scmp.eq.s32.totalorder %s28, 0
      %p148 = por %p146, %p147
      %p149 = scmp.ne.s32.totalorder %s135, %s136
      %p150 = scmp.eq.s32.totalorder %s29, 1
      %p151 = por %p149, %p150
      %p153 = scmp.ne.s32.totalorder %s136, %s152
      %p154 = scmp.eq.s32.totalorder %s29, 0
      %p155 = por %p153, %p154
      %p156 = scmp.le.s32.totalorder 1, %s23
      %p157 = scmp.lt.s32.totalorder %s23, 3
      %p158 = pnand %p156, %p157
      %p159 = pneg %p158
      // Predicated region
      $region9: #{_lambda_.1} parent=5 // pred_check
        _
      $region10: #{_lambda_.1} parent=5 // pred_check_branch
        %161 = sbr.rel (%p158) target = $region12
      $region11: #{_lambda_.1} parent=5 // pred_region
        %s162 = ssub.s32 %s23, 1
        // Predicated region
        $region13: #{_lambda_.1} parent=11 // pred_check
          %p163 = pneg %p96
        $region14: #{_lambda_.1} parent=11 // pred_check_branch
          %165 = sbr.rel (%p163) target = $region16
        $region15: #{_lambda_.1} parent=11 // pred_region
          %s167 = ssub.s32 1024, 1024
          %168 = vsyncadd [#allocation6], %s167
          %s169 = sshll.u32 [#allocation7], 4
          %s170 = int_to_ptr.vmem [resolvable:$true] %s169
          %175 = dma.hbm_to_vmem [thread:$0]  %s2, 1024, %s170, [#allocation6], 64, 64, 4
        $region16: #{_lambda_.1} parent=11 // pred_fallthru
          _
      $region12: #{_lambda_.1} parent=5 // pred_fallthru
        _
      %p176 = scmp.lt.s32.totalorder %s23, 2
      // Predicated region
      $region17: #{_lambda_.1} parent=5 // pred_check
        %p177 = pneg %p176
      $region18: #{_lambda_.1} parent=5 // pred_check_branch
        %179 = sbr.rel (%p177) target = $region20
      $region19: #{_lambda_.1} parent=5 // pred_region
        // Predicated region
        $region21: #{_lambda_.1} parent=19 // pred_check
          %p180 = pneg %p43
        $region22: #{_lambda_.1} parent=19 // pred_check_branch
          %182 = sbr.rel (%p180) target = $region24
        $region23: #{_lambda_.1} parent=19 // pred_region
          %s183 = sand.u32 %s33, 1
          %s184 = scalar_lea.sflag [#allocation3], %s183
          %s185 = sand.u32 %s33, 1
          %s186 = smul.addr %s185, 8
          %s187 = scalar_lea.vmem [#allocation2], %s186
          %s189 = ssub.s32 128, 128
          %190 = vsyncadd %s184, %s189
          %s191 = smul.addr %s23, 128
          %s192 = scalar_lea.hbm %s0, %s191
          %s194 = sshll.u32 %s187, 4
          %s195 = int_to_ptr.vmem [resolvable:$true] %s194
          %197 = dma.hbm_to_vmem [thread:$0]  %s192, 128, %s195, %s184
        $region24: #{_lambda_.1} parent=19 // pred_fallthru
          _
        // Predicated region
        $region25: #{_lambda_.1} parent=19 // pred_check
          %p198 = pneg %p69
        $region26: #{_lambda_.1} parent=19 // pred_check_branch
          %200 = sbr.rel (%p198) target = $region28
        $region27: #{_lambda_.1} parent=19 // pred_region
          %s201 = sand.u32 %s23, 1
          %s202 = scalar_lea.sflag [#allocation6], %s201
          %s203 = sand.u32 %s59, 1
          %s204 = smul.addr %s203, 8
          %s205 = scalar_lea.vmem [#allocation5], %s204
          %s207 = ssub.s32 128, 128
          %208 = vsyncadd %s202, %s207
          %s209 = smul.addr %s23, 128
          %s210 = scalar_lea.hbm %s1, %s209
          %s212 = sshll.u32 %s205, 4
          %s213 = int_to_ptr.vmem [resolvable:$true] %s212
          %215 = dma.hbm_to_vmem [thread:$0]  %s210, 128, %s213, %s202
        $region28: #{_lambda_.1} parent=19 // pred_fallthru
          _
      $region20: #{_lambda_.1} parent=5 // pred_fallthru
        _
      %p216 = scmp.le.s32.totalorder 1, %s23
      %p217 = scmp.lt.s32.totalorder %s23, 3
      %p218 = pnand %p216, %p217
      %p219 = pneg %p218
      // Predicated region
      $region29: #{_lambda_.1} parent=5 // pred_check
        _
      $region30: #{_lambda_.1} parent=5 // pred_check_branch
        %221 = sbr.rel (%p218) target = $region32
      $region31: #{_lambda_.1} parent=5 // pred_region
        %s222 = ssub.s32 %s23, 1
        %s223 = sand.u32 %s36, 1
        %s224 = scalar_lea.sflag [#allocation3], %s223
        %s225 = sand.u32 %s36, 1
        %s226 = smul.addr %s225, 8
        %s227 = scalar_lea.vmem [#allocation2], %s226
        // Predicated region
        $region33: #{_lambda_.1} parent=31 // pred_check
          %p228 = pneg %p49
        $region34: #{_lambda_.1} parent=31 // pred_check_branch
          %230 = sbr.rel (%p228) target = $region36
        $region35: #{_lambda_.1} parent=31 // pred_region
          %231 = dma.done %s224, 128
        $region36: #{_lambda_.1} parent=31 // pred_fallthru
          _
        %s232 = sand.u32 %s28, 1
        %s233 = scalar_lea.sflag [#allocation6], %s232
        %s234 = sand.u32 %s62, 1
        %s235 = smul.addr %s234, 8
        %s236 = scalar_lea.vmem [#allocation5], %s235
        // Predicated region
        $region37: #{_lambda_.1} parent=31 // pred_check
          %p237 = pneg %p75
        $region38: #{_lambda_.1} parent=31 // pred_check_branch
          %239 = sbr.rel (%p237) target = $region40
        $region39: #{_lambda_.1} parent=31 // pred_region
          %240 = dma.done %s233, 128
        $region40: #{_lambda_.1} parent=31 // pred_fallthru
          _
        // Predicated region
        $region41: #{_lambda_.1} parent=31 // pred_check
          %p241 = pneg %p96
        $region42: #{_lambda_.1} parent=31 // pred_check_branch
          %243 = sbr.rel (%p241) target = $region44
        $region43: #{_lambda_.1} parent=31 // pred_region
          %244 = dma.done [#allocation6], 1024
        $region44: #{_lambda_.1} parent=31 // pred_fallthru
          _
        %s245 = sand.u32 %s36, 1
        %s246 = scalar_lea.sflag [#allocation3], %s245
        %s247 = sand.u32 %s36, 1
        %s248 = smul.addr %s247, 8
        %s249 = scalar_lea.vmem [#allocation2], %s248
        %p250 = pneg %p49
        %p251 = pneg %p46
        %s252 = sand.u32 %s28, 1
        %s253 = scalar_lea.sflag [#allocation6], %s252
        %s254 = sand.u32 %s62, 1
        %s255 = smul.addr %s254, 8
        %s256 = scalar_lea.vmem [#allocation5], %s255
        %p257 = pneg %p75
        %p258 = pneg %p72
        %p259 = pneg %p96
        %p260 = pneg %p93
        %p261 = pneg %p122
        %p262 = pneg %p119
        %s263 = sand.u32 %s109, 1
        %s264 = scalar_lea.sflag [#allocation4], %s263
        %s265 = sand.u32 %s109, 1
        %s266 = smul.addr %s265, 8
        %s267 = scalar_lea.vmem [#allocation8], %s266
        %p268 = pneg %p148
        %p269 = pneg %p145
        %s270 = sand.u32 %s135, 1
        %s271 = scalar_lea.sflag [#allocation10], %s270
        %s272 = sand.u32 %s135, 1
        %s273 = smul.addr %s272, 8
        %s274 = scalar_lea.vmem [#allocation9], %s273
        %v276 = vld [vmem:[#allocation7] sm:$0xf]
        %v277 = vld [vmem:[#allocation7 + $0x4] sm:$0xf]
        %v278 = vld [vmem:[#allocation7 + $0x8] sm:$0xf]
        %v279 = vld [vmem:[#allocation7 + $0xc] sm:$0xf]
        %v280 = vld [vmem:[#allocation7 + $0x10] sm:$0xf]
        %v281 = vld [vmem:[#allocation7 + $0x14] sm:$0xf]
        %v282 = vld [vmem:[#allocation7 + $0x18] sm:$0xf]
        %v283 = vld [vmem:[#allocation7 + $0x1c] sm:$0xf]
        %v284 = vld [vmem:[#allocation7 + $0x20] sm:$0xf]
        %v285 = vld [vmem:[#allocation7 + $0x24] sm:$0xf]
        %v286 = vld [vmem:[#allocation7 + $0x28] sm:$0xf]
        %v287 = vld [vmem:[#allocation7 + $0x2c] sm:$0xf]
        %v288 = vld [vmem:[#allocation7 + $0x30] sm:$0xf]
        %v289 = vld [vmem:[#allocation7 + $0x34] sm:$0xf]
        %v290 = vld [vmem:[#allocation7 + $0x38] sm:$0xf]
        %v291 = vld [vmem:[#allocation7 + $0x3c] sm:$0xf]
        %v292 = vld [vmem:[%s227] sm:$0xff]
        %v294 = vand.u32 %v292, 4294901760
        %v296 = vsub.f32 %v292, %v294
        %v298 = vand.u32 %v296, 4294901760
        %v300 = vsub.f32 %v296, %v298
        %v301 = vpack.c.bf16 %v294, %v294
        %v302 = vpack.c.bf16 %v298, %v298
        %v303 = vpack.c.bf16 %v300, %v300
        %v320 = vunpack.c.l.b16 %v276
        %v321 = vunpack.c.l.b16 %v277
        %v322 = vunpack.c.l.b16 %v278
        %v323 = vunpack.c.l.b16 %v279
        %v324 = vunpack.c.l.b16 %v280
        %v325 = vunpack.c.l.b16 %v281
        %v326 = vunpack.c.l.b16 %v282
        %v327 = vunpack.c.l.b16 %v283
        %v328 = vunpack.c.l.b16 %v284
        %v329 = vunpack.c.l.b16 %v285
        %v330 = vunpack.c.l.b16 %v286
        %v331 = vunpack.c.l.b16 %v287
        %v332 = vunpack.c.l.b16 %v288
        %v333 = vunpack.c.l.b16 %v289
        %v334 = vunpack.c.l.b16 %v290
        %v335 = vunpack.c.l.b16 %v291
        %v336 = vpack.c.b16 %v321, %v320
        %v337 = vpack.c.b16 %v323, %v322
        %v338 = vpack.c.b16 %v325, %v324
        %v339 = vpack.c.b16 %v327, %v326
        %v340 = vpack.c.b16 %v329, %v328
        %v341 = vpack.c.b16 %v331, %v330
        %v342 = vpack.c.b16 %v333, %v332
        %v343 = vpack.c.b16 %v335, %v334
        %352 = vmatprep.subr.bf16.mxu0 0
        %353 = vmatpush1.bf16.msra.mxu0 %v336
        %354 = vmatprep.subr.bf16.mxu0 0
        %355 = vmatpush1.bf16.msra.mxu0 %v337
        %356 = vmatprep.subr.bf16.mxu0 0
        %357 = vmatpush1.bf16.msra.mxu0 %v338
        %358 = vmatprep.subr.bf16.mxu0 0
        %359 = vmatpush1.bf16.msra.mxu0 %v339
        %360 = vmatprep.subr.bf16.mxu0 0
        %361 = vmatpush1.bf16.msra.mxu0 %v340
        %362 = vmatprep.subr.bf16.mxu0 0
        %363 = vmatpush1.bf16.msra.mxu0 %v341
        %364 = vmatprep.subr.bf16.mxu0 0
        %365 = vmatpush1.bf16.msra.mxu0 %v342
        %366 = vmatprep.subr.bf16.mxu0 0
        %367 = vmatpush1.bf16.msra.mxu0 %v343
        %368 = vmatprep.subr.bf16.mxu0 0
        %369 = vmatpush1.bf16.msra.mxu0 0
        %370 = vmatprep.subr.bf16.mxu0 0
        %371 = vmatpush1.bf16.msra.mxu0 0
        %372 = vmatprep.subr.bf16.mxu0 0
        %373 = vmatpush1.bf16.msra.mxu0 0
        %374 = vmatprep.subr.bf16.mxu0 0
        %375 = vmatpush1.bf16.msra.mxu0 0
        %376 = vmatprep.subr.bf16.mxu0 0
        %377 = vmatpush1.bf16.msra.mxu0 0
        %378 = vmatprep.subr.bf16.mxu0 0
        %379 = vmatpush1.bf16.msra.mxu0 0
        %380 = vmatprep.subr.bf16.mxu0 0
        %381 = vmatpush1.bf16.msra.mxu0 0
        %382 = vmatprep.subr.bf16.mxu0 0
        %383 = vmatpush1.bf16.msra.mxu0 0
        %384 = vmatprep.mubr.bf16.mxu0 0
        %385 = vmatmul.mubr.bf16.gmra.mrb[0].mxu0 %v302
        %v386 = vpop.f32.mrb[0].mxu0
        %v387 = vadd.f32 0.0, %v386
        %v388 = vpop.f32.mrb[0].mxu0
        %v389 = vpop.f32.mrb[0].mxu0
        %v390 = vpop.f32.mrb[0].mxu0
        %391 = vdwg.mxu0
        %392 = vmatprep.subr.bf16.mxu0 0
        %393 = vmatpush1.bf16.msra.mxu0 %v336
        %394 = vmatprep.subr.bf16.mxu0 0
        %395 = vmatpush1.bf16.msra.mxu0 %v337
        %396 = vmatprep.subr.bf16.mxu0 0
        %397 = vmatpush1.bf16.msra.mxu0 %v338
        %398 = vmatprep.subr.bf16.mxu0 0
        %399 = vmatpush1.bf16.msra.mxu0 %v339
        %400 = vmatprep.subr.bf16.mxu0 0
        %401 = vmatpush1.bf16.msra.mxu0 %v340
        %402 = vmatprep.subr.bf16.mxu0 0
        %403 = vmatpush1.bf16.msra.mxu0 %v341
        %404 = vmatprep.subr.bf16.mxu0 0
        %405 = vmatpush1.bf16.msra.mxu0 %v342
        %406 = vmatprep.subr.bf16.mxu0 0
        %407 = vmatpush1.bf16.msra.mxu0 %v343
        %408 = vmatprep.subr.bf16.mxu0 0
        %409 = vmatpush1.bf16.msra.mxu0 0
        %410 = vmatprep.subr.bf16.mxu0 0
        %411 = vmatpush1.bf16.msra.mxu0 0
        %412 = vmatprep.subr.bf16.mxu0 0
        %413 = vmatpush1.bf16.msra.mxu0 0
        %414 = vmatprep.subr.bf16.mxu0 0
        %415 = vmatpush1.bf16.msra.mxu0 0
        %416 = vmatprep.subr.bf16.mxu0 0
        %417 = vmatpush1.bf16.msra.mxu0 0
        %418 = vmatprep.subr.bf16.mxu0 0
        %419 = vmatpush1.bf16.msra.mxu0 0
        %420 = vmatprep.subr.bf16.mxu0 0
        %421 = vmatpush1.bf16.msra.mxu0 0
        %422 = vmatprep.subr.bf16.mxu0 0
        %423 = vmatpush1.bf16.msra.mxu0 0
        %424 = vmatprep.mubr.bf16.mxu0 0
        %425 = vmatmul.mubr.bf16.gmra.mrb[0].mxu0 %v301
        %v426 = vpop.f32.mrb[0].mxu0
        %v427 = vadd.f32 %v387, %v426
        %v428 = vpop.f32.mrb[0].mxu0
        %v429 = vpop.f32.mrb[0].mxu0
        %v430 = vpop.f32.mrb[0].mxu0
        %431 = vdwg.mxu0
        %432 = vmatprep.subr.bf16.mxu0 0
        %433 = vmatpush1.bf16.msra.mxu0 %v336
        %434 = vmatprep.subr.bf16.mxu0 0
        %435 = vmatpush1.bf16.msra.mxu0 %v337
        %436 = vmatprep.subr.bf16.mxu0 0
        %437 = vmatpush1.bf16.msra.mxu0 %v338
        %438 = vmatprep.subr.bf16.mxu0 0
        %439 = vmatpush1.bf16.msra.mxu0 %v339
        %440 = vmatprep.subr.bf16.mxu0 0
        %441 = vmatpush1.bf16.msra.mxu0 %v340
        %442 = vmatprep.subr.bf16.mxu0 0
        %443 = vmatpush1.bf16.msra.mxu0 %v341
        %444 = vmatprep.subr.bf16.mxu0 0
        %445 = vmatpush1.bf16.msra.mxu0 %v342
        %446 = vmatprep.subr.bf16.mxu0 0
        %447 = vmatpush1.bf16.msra.mxu0 %v343
        %448 = vmatprep.subr.bf16.mxu0 0
        %449 = vmatpush1.bf16.msra.mxu0 0
        %450 = vmatprep.subr.bf16.mxu0 0
        %451 = vmatpush1.bf16.msra.mxu0 0
        %452 = vmatprep.subr.bf16.mxu0 0
        %453 = vmatpush1.bf16.msra.mxu0 0
        %454 = vmatprep.subr.bf16.mxu0 0
        %455 = vmatpush1.bf16.msra.mxu0 0
        %456 = vmatprep.subr.bf16.mxu0 0
        %457 = vmatpush1.bf16.msra.mxu0 0
        %458 = vmatprep.subr.bf16.mxu0 0
        %459 = vmatpush1.bf16.msra.mxu0 0
        %460 = vmatprep.subr.bf16.mxu0 0
        %461 = vmatpush1.bf16.msra.mxu0 0
        %462 = vmatprep.subr.bf16.mxu0 0
        %463 = vmatpush1.bf16.msra.mxu0 0
        %464 = vmatprep.mubr.bf16.mxu0 0
        %465 = vmatmul.mubr.bf16.gmra.mrb[0].mxu0 %v303
        %v466 = vpop.f32.mrb[0].mxu0
        %v467 = vadd.f32 0.0, %v466
        %v468 = vpop.f32.mrb[0].mxu0
        %v469 = vpop.f32.mrb[0].mxu0
        %v470 = vpop.f32.mrb[0].mxu0
        %471 = vdwg.mxu0
        %v472 = vadd.f32 %v427, %v467
        %473 = vst [vmem:[%s267] sm:$0xff] %v472
        %v474 = vld [vmem:[%s236] sm:$0xff]
        %v476 = vand.u32 %v474, 4294901760
        %v478 = vsub.f32 %v474, %v476
        %v480 = vand.u32 %v478, 4294901760
        %v482 = vsub.f32 %v478, %v480
        %v483 = vpack.c.bf16 %v476, %v476
        %v484 = vpack.c.bf16 %v480, %v480
        %v485 = vpack.c.bf16 %v482, %v482
        %486 = vmatprep.subr.bf16.mxu0 0
        %487 = vmatpush1.bf16.msra.mxu0 %v336
        %488 = vmatprep.subr.bf16.mxu0 0
        %489 = vmatpush1.bf16.msra.mxu0 %v337
        %490 = vmatprep.subr.bf16.mxu0 0
        %491 = vmatpush1.bf16.msra.mxu0 %v338
        %492 = vmatprep.subr.bf16.mxu0 0
        %493 = vmatpush1.bf16.msra.mxu0 %v339
        %494 = vmatprep.subr.bf16.mxu0 0
        %495 = vmatpush1.bf16.msra.mxu0 %v340
        %496 = vmatprep.subr.bf16.mxu0 0
        %497 = vmatpush1.bf16.msra.mxu0 %v341
        %498 = vmatprep.subr.bf16.mxu0 0
        %499 = vmatpush1.bf16.msra.mxu0 %v342
        %500 = vmatprep.subr.bf16.mxu0 0
        %501 = vmatpush1.bf16.msra.mxu0 %v343
        %502 = vmatprep.subr.bf16.mxu0 0
        %503 = vmatpush1.bf16.msra.mxu0 0
        %504 = vmatprep.subr.bf16.mxu0 0
        %505 = vmatpush1.bf16.msra.mxu0 0
        %506 = vmatprep.subr.bf16.mxu0 0
        %507 = vmatpush1.bf16.msra.mxu0 0
        %508 = vmatprep.subr.bf16.mxu0 0
        %509 = vmatpush1.bf16.msra.mxu0 0
        %510 = vmatprep.subr.bf16.mxu0 0
        %511 = vmatpush1.bf16.msra.mxu0 0
        %512 = vmatprep.subr.bf16.mxu0 0
        %513 = vmatpush1.bf16.msra.mxu0 0
        %514 = vmatprep.subr.bf16.mxu0 0
        %515 = vmatpush1.bf16.msra.mxu0 0
        %516 = vmatprep.subr.bf16.mxu0 0
        %517 = vmatpush1.bf16.msra.mxu0 0
        %518 = vmatprep.mubr.bf16.mxu0 0
        %519 = vmatmul.mubr.bf16.gmra.mrb[0].mxu0 %v484
        %v520 = vpop.f32.mrb[0].mxu0
        %v521 = vadd.f32 0.0, %v520
        %v522 = vpop.f32.mrb[0].mxu0
        %v523 = vpop.f32.mrb[0].mxu0
        %v524 = vpop.f32.mrb[0].mxu0
        %525 = vdwg.mxu0
        %526 = vmatprep.subr.bf16.mxu0 0
        %527 = vmatpush1.bf16.msra.mxu0 %v336
        %528 = vmatprep.subr.bf16.mxu0 0
        %529 = vmatpush1.bf16.msra.mxu0 %v337
        %530 = vmatprep.subr.bf16.mxu0 0
        %531 = vmatpush1.bf16.msra.mxu0 %v338
        %532 = vmatprep.subr.bf16.mxu0 0
        %533 = vmatpush1.bf16.msra.mxu0 %v339
        %534 = vmatprep.subr.bf16.mxu0 0
        %535 = vmatpush1.bf16.msra.mxu0 %v340
        %536 = vmatprep.subr.bf16.mxu0 0
        %537 = vmatpush1.bf16.msra.mxu0 %v341
        %538 = vmatprep.subr.bf16.mxu0 0
        %539 = vmatpush1.bf16.msra.mxu0 %v342
        %540 = vmatprep.subr.bf16.mxu0 0
        %541 = vmatpush1.bf16.msra.mxu0 %v343
        %542 = vmatprep.subr.bf16.mxu0 0
        %543 = vmatpush1.bf16.msra.mxu0 0
        %544 = vmatprep.subr.bf16.mxu0 0
        %545 = vmatpush1.bf16.msra.mxu0 0
        %546 = vmatprep.subr.bf16.mxu0 0
        %547 = vmatpush1.bf16.msra.mxu0 0
        %548 = vmatprep.subr.bf16.mxu0 0
        %549 = vmatpush1.bf16.msra.mxu0 0
        %550 = vmatprep.subr.bf16.mxu0 0
        %551 = vmatpush1.bf16.msra.mxu0 0
        %552 = vmatprep.subr.bf16.mxu0 0
        %553 = vmatpush1.bf16.msra.mxu0 0
        %554 = vmatprep.subr.bf16.mxu0 0
        %555 = vmatpush1.bf16.msra.mxu0 0
        %556 = vmatprep.subr.bf16.mxu0 0
        %557 = vmatpush1.bf16.msra.mxu0 0
        %558 = vmatprep.mubr.bf16.mxu0 0
        %559 = vmatmul.mubr.bf16.gmra.mrb[0].mxu0 %v483
        %v560 = vpop.f32.mrb[0].mxu0
        %v561 = vadd.f32 %v521, %v560
        %v562 = vpop.f32.mrb[0].mxu0
        %v563 = vpop.f32.mrb[0].mxu0
        %v564 = vpop.f32.mrb[0].mxu0
        %565 = vdwg.mxu0
        %566 = vmatprep.subr.bf16.mxu0 0
        %567 = vmatpush1.bf16.msra.mxu0 %v336
        %568 = vmatprep.subr.bf16.mxu0 0
        %569 = vmatpush1.bf16.msra.mxu0 %v337
        %570 = vmatprep.subr.bf16.mxu0 0
        %571 = vmatpush1.bf16.msra.mxu0 %v338
        %572 = vmatprep.subr.bf16.mxu0 0
        %573 = vmatpush1.bf16.msra.mxu0 %v339
        %574 = vmatprep.subr.bf16.mxu0 0
        %575 = vmatpush1.bf16.msra.mxu0 %v340
        %576 = vmatprep.subr.bf16.mxu0 0
        %577 = vmatpush1.bf16.msra.mxu0 %v341
        %578 = vmatprep.subr.bf16.mxu0 0
        %579 = vmatpush1.bf16.msra.mxu0 %v342
        %580 = vmatprep.subr.bf16.mxu0 0
        %581 = vmatpush1.bf16.msra.mxu0 %v343
        %582 = vmatprep.subr.bf16.mxu0 0
        %583 = vmatpush1.bf16.msra.mxu0 0
        %584 = vmatprep.subr.bf16.mxu0 0
        %585 = vmatpush1.bf16.msra.mxu0 0
        %586 = vmatprep.subr.bf16.mxu0 0
        %587 = vmatpush1.bf16.msra.mxu0 0
        %588 = vmatprep.subr.bf16.mxu0 0
        %589 = vmatpush1.bf16.msra.mxu0 0
        %590 = vmatprep.subr.bf16.mxu0 0
        %591 = vmatpush1.bf16.msra.mxu0 0
        %592 = vmatprep.subr.bf16.mxu0 0
        %593 = vmatpush1.bf16.msra.mxu0 0
        %594 = vmatprep.subr.bf16.mxu0 0
        %595 = vmatpush1.bf16.msra.mxu0 0
        %596 = vmatprep.subr.bf16.mxu0 0
        %597 = vmatpush1.bf16.msra.mxu0 0
        %598 = vmatprep.mubr.bf16.mxu0 0
        %599 = vmatmul.mubr.bf16.gmra.mrb[0].mxu0 %v485
        %v600 = vpop.f32.mrb[0].mxu0
        %v601 = vadd.f32 0.0, %v600
        %v602 = vpop.f32.mrb[0].mxu0
        %v603 = vpop.f32.mrb[0].mxu0
        %v604 = vpop.f32.mrb[0].mxu0
        %605 = vdwg.mxu0
        %v606 = vadd.f32 %v561, %v601
        %607 = vst [vmem:[%s274] sm:$0xff] %v606
        %s608 = sand.u32 %s109, 1
        %s609 = scalar_lea.sflag [#allocation4], %s608
        %s610 = sand.u32 %s109, 1
        %s611 = smul.addr %s610, 8
        %s612 = scalar_lea.vmem [#allocation8], %s611
        %s613 = sand.u32 %s135, 1
        %s614 = scalar_lea.sflag [#allocation10], %s613
        %s615 = sand.u32 %s135, 1
        %s616 = smul.addr %s615, 8
        %s617 = scalar_lea.vmem [#allocation9], %s616
        // Predicated region
        $region45: #{_lambda_.1} parent=31 // pred_check
          %p618 = pneg %p119
        $region46: #{_lambda_.1} parent=31 // pred_check_branch
          %620 = sbr.rel (%p618) target = $region48
        $region47: #{_lambda_.1} parent=31 // pred_region
          %s622 = ssub.s32 128, 128
          %623 = vsyncadd %s609, %s622
          %s624 = smul.addr %s28, 128
          %s625 = scalar_lea.hbm %s3, %s624
          %s627 = sshll.u32 %s612, 4
          %s628 = int_to_ptr.vmem [resolvable:$true] %s627
          %630 = dma.vmem_to_hbm [thread:$0]  %s628, 128, %s625, %s609
        $region48: #{_lambda_.1} parent=31 // pred_fallthru
          _
        // Predicated region
        $region49: #{_lambda_.1} parent=31 // pred_check
          %p631 = pneg %p145
        $region50: #{_lambda_.1} parent=31 // pred_check_branch
          %633 = sbr.rel (%p631) target = $region52
        $region51: #{_lambda_.1} parent=31 // pred_region
          %s635 = ssub.s32 128, 128
          %636 = vsyncadd %s614, %s635
          %s637 = smul.addr %s28, 128
          %s638 = scalar_lea.hbm %s4, %s637
          %s640 = sshll.u32 %s617, 4
          %s641 = int_to_ptr.vmem [resolvable:$true] %s640
          %643 = dma.vmem_to_hbm [thread:$0]  %s641, 128, %s638, %s614
        $region52: #{_lambda_.1} parent=31 // pred_fallthru
          _
      $region32: #{_lambda_.1} parent=5 // pred_fallthru
        _
      %p644 = scmp.le.s32.totalorder 2, %s23
      // Predicated region
      $region53: #{_lambda_.1} parent=5 // pred_check
        %p645 = pneg %p644
      $region54: #{_lambda_.1} parent=5 // pred_check_branch
        %647 = sbr.rel (%p645) target = $region56
      $region55: #{_lambda_.1} parent=5 // pred_region
        %s648 = ssub.s32 %s23, 2
        // Predicated region
        $region57: #{_lambda_.1} parent=55 // pred_check
          %p649 = pneg %p125
        $region58: #{_lambda_.1} parent=55 // pred_check_branch
          %651 = sbr.rel (%p649) target = $region60
        $region59: #{_lambda_.1} parent=55 // pred_region
          %s652 = sand.u32 %s110, 1
          %s653 = scalar_lea.sflag [#allocation4], %s652
          %s654 = sand.u32 %s110, 1
          %s655 = smul.addr %s654, 8
          %s656 = scalar_lea.vmem [#allocation8], %s655
          %657 = dma.done %s653, 128
        $region60: #{_lambda_.1} parent=55 // pred_fallthru
          _
        // Predicated region
        $region61: #{_lambda_.1} parent=55 // pred_check
          %p658 = pneg %p151
        $region62: #{_lambda_.1} parent=55 // pred_check_branch
          %660 = sbr.rel (%p658) target = $region64
        $region63: #{_lambda_.1} parent=55 // pred_region
          %s661 = sand.u32 %s136, 1
          %s662 = scalar_lea.sflag [#allocation10], %s661
          %s663 = sand.u32 %s136, 1
          %s664 = smul.addr %s663, 8
          %s665 = scalar_lea.vmem [#allocation9], %s664
          %666 = dma.done %s662, 128
        $region64: #{_lambda_.1} parent=55 // pred_fallthru
          _
      $region56: #{_lambda_.1} parent=5 // pred_fallthru
        _
    $region6: #{_lambda_.1} parent=1 // loop_footer
      %s27 = sadd.s32 1, %s23
    $region7: #{_lambda_.1} parent=1 // loop_footer_branch
      %22 = sbr.rel target = $region3
    $region8: #{_lambda_.1} parent=1 // loop_exit
      _
    %667 = vsyncpa [#allocation3], 1
    %s668 = scalar_lea.sflag [#allocation3], 1
    %669 = vsyncpa %s668, 1
    %670 = vsyncpa [#allocation6], 1
    %s671 = scalar_lea.sflag [#allocation6], 1
    %672 = vsyncpa %s671, 1
    %673 = vsyncpa [#allocation4], 1
    %s674 = scalar_lea.sflag [#allocation4], 1
    %675 = vsyncpa %s674, 1
    %676 = vsyncpa [#allocation10], 1
    %s677 = scalar_lea.sflag [#allocation10], 1
    %678 = vsyncpa %s677, 1

</llo_original>
